<compile_context>
chip_gen: v7x
topology: tpu7x:2x2x1
jax: 0.10.0
libtpu: 0.0.40
codegen_flags: <defaults>
</compile_context>

<pallas_src>
import functools

import jax
import jax.numpy as jnp
from jax.experimental import pallas as pl
from jax.experimental.pallas import tpu as pltpu


_NEG_BIG = -1e30  # padded-class logit value -> exp() underflows to 0 in log_softmax


# --------------------------------------------------------------------------------------
# Kernel: one SAGEConv layer (mean aggregation) for one row-block of nodes.
# --------------------------------------------------------------------------------------
def _sage_layer_kernel(adj_ref, feat_ref, deginv_ref, wcat_ref, b_ref, out_ref, *,
                       block_rows, apply_relu, apply_log_softmax):
    j = pl.program_id(0)
    row0 = pl.multiple_of(j * block_rows, block_rows)

    feat_all = feat_ref[...]                              # (N, Fin)   bf16, resident
    feat_self = feat_ref[pl.ds(row0, block_rows), :]      # (tm, Fin)  this block's own features

    # Mean aggregation over neighbors: (tm, N) @ (N, Fin) on the MXU, f32 accumulation.
    agg = jnp.dot(adj_ref[...], feat_all, preferred_element_type=jnp.float32)
    agg = agg * deginv_ref[...]                           # (tm, Fin) * (tm, 1)

    # Fused [agg | self] @ [[W_l]; [W_r]]  ->  single dot with K = 2 * Fin.
    cat = jnp.concatenate([agg.astype(feat_all.dtype), feat_self], axis=1)
    h = jnp.dot(cat, wcat_ref[...], preferred_element_type=jnp.float32) + b_ref[...]

    if apply_relu:
        h = jnp.maximum(h, 0.0)

    if apply_log_softmax:
        m = jnp.max(h, axis=1, keepdims=True)
        z = h - m
        lse = jnp.log(jnp.sum(jnp.exp(z), axis=1, keepdims=True))
        h = z - lse

    out_ref[...] = h.astype(out_ref.dtype)


def _sage_layer(adj, feat, deg_inv, w_cat, b, *, block_rows, apply_relu,
                apply_log_softmax, out_dtype):
    n = adj.shape[0]
    fin = feat.shape[1]
    fout = w_cat.shape[1]
    assert n % block_rows == 0
    assert block_rows == n or block_rows % 8 == 0
    grid = (n // block_rows,)

    kernel = functools.partial(_sage_layer_kernel, block_rows=block_rows,
                               apply_relu=apply_relu,
                               apply_log_softmax=apply_log_softmax)
    return pl.pallas_call(
        kernel,
        out_shape=jax.ShapeDtypeStruct((n, fout), out_dtype),
        grid=grid,
        in_specs=[
            pl.BlockSpec((block_rows, n), lambda j: (j, 0)),   # adjacency row block
            pl.BlockSpec((n, fin), lambda j: (0, 0)),          # all node features (resident)
            pl.BlockSpec((block_rows, 1), lambda j: (j, 0)),   # 1/deg for this row block
            pl.BlockSpec((2 * fin, fout), lambda j: (0, 0)),   # stacked [[W_l];[W_r]]
            pl.BlockSpec((1, fout), lambda j: (0, 0)),         # bias (padded to fout lanes)
        ],
        out_specs=pl.BlockSpec((block_rows, fout), lambda j: (j, 0)),
        compiler_params=pltpu.CompilerParams(
            dimension_semantics=("parallel",)),
    )(adj, feat, deg_inv, w_cat, b)


# --------------------------------------------------------------------------------------
# Wrapper: parameter packing + 2-layer forward.
# --------------------------------------------------------------------------------------
def _round_up(v, m):
    return ((v + m - 1) // m) * m


def _pick_block_rows(n):
    if n % 8 != 0:
        return n
    for cand in (512, 256, 128, 64, 32, 16, 8):
        if n % cand == 0:
            return cand
    return n


def _stack_pad(wl, wr, b, fin_pad, fout_pad, bias_pad_value=0.0):
    """Stack [[W_l];[W_r]] and zero-pad input/output dims; pad bias lanes."""
    def pad_w(w):
        fi, fo = w.shape
        return jnp.pad(w, ((0, fin_pad - fi), (0, fout_pad - fo)))
    w = jnp.concatenate([pad_w(wl), pad_w(wr)], axis=0).astype(jnp.bfloat16)
    b = b.astype(jnp.float32).reshape(1, -1)
    b = jnp.pad(b, ((0, 0), (0, fout_pad - b.shape[1])),
                constant_values=bias_pad_value)
    return w, b


def graphsage_forward(x, adj, params, *, block_rows=None):
    n, nfeat = x.shape
    nhid = params["w1l"].shape[1]
    nclass = params["w2l"].shape[1]
    hpad = _round_up(nhid, 128)    # lane-dense hidden layer
    cpad = _round_up(nclass, 128)  # lane-dense class layer
    if block_rows is None:
        block_rows = _pick_block_rows(n)

    # Hoisted degree reduction: one XLA reduce instead of an in-kernel O(N^2) pass.
    deg = jnp.sum(adj, axis=1, keepdims=True).astype(jnp.float32)
    deg_inv = jnp.where(deg > 0.0, 1.0 / deg, 0.0)

    adj_b = adj.astype(jnp.bfloat16)   # 0/1 adjacency: bf16 cast is lossless
    x_b = x.astype(jnp.bfloat16)

    w1, b1 = _stack_pad(params["w1l"], params["w1r"], params["b1"],
                        fin_pad=nfeat, fout_pad=hpad, bias_pad_value=0.0)
    w2, b2 = _stack_pad(params["w2l"], params["w2r"], params["b2"],
                        fin_pad=hpad, fout_pad=cpad, bias_pad_value=_NEG_BIG)

    h1 = _sage_layer(adj_b, x_b, deg_inv, w1, b1,
                     block_rows=block_rows, apply_relu=True,
                     apply_log_softmax=False, out_dtype=jnp.bfloat16)      # (N, hpad)
    logp = _sage_layer(adj_b, h1, deg_inv, w2, b2,
                       block_rows=block_rows, apply_relu=False,
                       apply_log_softmax=True, out_dtype=jnp.float32)      # (N, cpad)
    return logp[:, :nclass]


# --------------------------------------------------------------------------------------
# Synthetic parameters + pure-JAX reference (mirrors the kernel's bf16/f32 precision).
# --------------------------------------------------------------------------------------
def init_params(key, nfeat, nhid, nclass):
    ks = jax.random.split(key, 4)

    def glorot(k, fan_in, fan_out):
        lim = (6.0 / (fan_in + fan_out)) ** 0.5
        return jax.random.uniform(k, (fan_in, fan_out), jnp.float32, -lim, lim)

    return {
        "w1l": glorot(ks[0], nfeat, nhid),   # acts on aggregated neighbors
        "w1r": glorot(ks[1], nfeat, nhid),   # acts on self features
        "b1":  jnp.zeros((1, nhid), jnp.float32),
        "w2l": glorot(ks[2], nhid, nclass),
        "w2r": glorot(ks[3], nhid, nclass),
        "b2":  jnp.zeros((1, nclass), jnp.float32),
    }


def reference_forward(x, adj, params):
    bf = jnp.bfloat16
    adj_b = adj.astype(bf)
    x_b = x.astype(bf)
    deg = jnp.sum(adj, axis=1, keepdims=True)
    deg_inv = jnp.where(deg > 0.0, 1.0 / deg, 0.0)

    w1 = jnp.concatenate([params["w1l"], params["w1r"]], axis=0).astype(bf)
    w2 = jnp.concatenate([params["w2l"], params["w2r"]], axis=0).astype(bf)

    agg1 = jnp.dot(adj_b, x_b, preferred_element_type=jnp.float32) * deg_inv
    cat1 = jnp.concatenate([agg1.astype(bf), x_b], axis=1)
    h1 = jnp.dot(cat1, w1, preferred_element_type=jnp.float32) + params["b1"]
    h1 = jnp.maximum(h1, 0.0).astype(bf)

    agg2 = jnp.dot(adj_b, h1, preferred_element_type=jnp.float32) * deg_inv
    cat2 = jnp.concatenate([agg2.astype(bf), h1], axis=1)
    h2 = jnp.dot(cat2, w2, preferred_element_type=jnp.float32) + params["b2"]
    return jax.nn.log_softmax(h2, axis=1)


if __name__ == "__main__":
    key = jax.random.PRNGKey(0)
    k_x, k_adj, k_p = jax.random.split(key, 3)

    N, nfeat, nhid, nclass = 64, 32, 32, 8

    x = jax.random.normal(k_x, (N, nfeat), jnp.float32)
    # symmetric 0/1 adjacency with self loops
    a = (jax.random.uniform(k_adj, (N, N)) < 0.1).astype(jnp.float32)
    adj = jnp.clip(a + a.T + jnp.eye(N, dtype=jnp.float32), 0.0, 1.0)

    params = init_params(k_p, nfeat, nhid, nclass)

    out = graphsage_forward(x, adj, params, block_rows=32)   # grid of 2 row blocks
    out = jax.block_until_ready(out)

    ref = reference_forward(x, adj, params)
    assert out.shape == (N, nclass)
    assert jnp.allclose(out, ref, atol=1e-3, rtol=1e-3), float(jnp.max(jnp.abs(out - ref)))

    print("KERNEL_OK")
</pallas_src>

<mosaic_0001>
module attributes {stable_mosaic.version = 11 : i64} {
  func.func @_sage_layer_kernel(%arg0: i32, %arg1: memref<32x64xbf16, #tpu.memory_space<vmem>>, %arg2: memref<64x32xbf16, #tpu.memory_space<vmem>>, %arg3: memref<32x1xf32, #tpu.memory_space<vmem>>, %arg4: memref<64x128xbf16, #tpu.memory_space<vmem>>, %arg5: memref<1x128xf32, #tpu.memory_space<vmem>>, %arg6: memref<32x128xbf16, #tpu.memory_space<vmem>>) attributes {dimension_semantics = [#tpu.dimension_semantics<parallel>], iteration_bounds = array<i64: 2>, scalar_prefetch = 0 : i64, scratch_operands = 0 : i64, tpu.core_type = #tpu.core_type<tc>, window_params = [{transform_indices = @transform_0, window_bounds = array<i64: 32, 64>}, {pipeline_mode = #tpu.pipeline_mode<synchronous>, transform_indices = @transform_1, window_bounds = array<i64: 64, 32>}, {transform_indices = @transform_2, window_bounds = array<i64: 32, 1>}, {pipeline_mode = #tpu.pipeline_mode<synchronous>, transform_indices = @transform_3, window_bounds = array<i64: 64, 128>}, {pipeline_mode = #tpu.pipeline_mode<synchronous>, transform_indices = @transform_4, window_bounds = array<i64: 1, 128>}, {transform_indices = @transform_5, window_bounds = array<i64: 32, 128>}]} {
    %c32_i32 = arith.constant 32 : i32
    %0 = arith.muli %arg0, %c32_i32 : i32
    %1 = tpu.assume_multiple %0, 32 : i32
    %c0 = arith.constant 0 : index
    %c0_0 = arith.constant 0 : index
    %2 = vector.load %arg2[%c0, %c0_0] : memref<64x32xbf16, #tpu.memory_space<vmem>>, vector<64x32xbf16>
    %3 = arith.index_cast %1 : i32 to index
    %c0_1 = arith.constant 0 : index
    %4 = vector.load %arg2[%3, %c0_1] : memref<64x32xbf16, #tpu.memory_space<vmem>>, vector<32x32xbf16>
    %c0_2 = arith.constant 0 : index
    %c0_3 = arith.constant 0 : index
    %5 = vector.load %arg1[%c0_2, %c0_3] : memref<32x64xbf16, #tpu.memory_space<vmem>>, vector<32x64xbf16>
    %cst = arith.constant dense<0.000000e+00> : vector<32x32xf32>
    %6 = tpu.matmul %5, %2, %cst {dimension_numbers = #tpu.dot_dimension_numbers<[1], [0], [0], [1], [0, 0, 1, 1], [], []>} : vector<32x64xbf16>, vector<64x32xbf16>, vector<32x32xf32> -> vector<32x32xf32>
    %c0_4 = arith.constant 0 : index
    %c0_5 = arith.constant 0 : index
    %7 = vector.load %arg3[%c0_4, %c0_5] : memref<32x1xf32, #tpu.memory_space<vmem>>, vector<32x1xf32>
    %8 = vector.broadcast %7 : vector<32x1xf32> to vector<32x32xf32>
    %9 = arith.mulf %6, %8 : vector<32x32xf32>
    %10 = arith.truncf %9 : vector<32x32xf32> to vector<32x32xbf16>
    %11 = tpu.concatenate %10, %4 in 1 : vector<32x32xbf16>, vector<32x32xbf16> -> vector<32x64xbf16>
    %c0_6 = arith.constant 0 : index
    %c0_7 = arith.constant 0 : index
    %12 = vector.load %arg4[%c0_6, %c0_7] : memref<64x128xbf16, #tpu.memory_space<vmem>>, vector<64x128xbf16>
    %cst_8 = arith.constant dense<0.000000e+00> : vector<32x128xf32>
    %13 = tpu.matmul %11, %12, %cst_8 {dimension_numbers = #tpu.dot_dimension_numbers<[1], [0], [0], [1], [0, 0, 1, 1], [], []>} : vector<32x64xbf16>, vector<64x128xbf16>, vector<32x128xf32> -> vector<32x128xf32>
    %c0_9 = arith.constant 0 : index
    %c0_10 = arith.constant 0 : index
    %14 = vector.load %arg5[%c0_9, %c0_10] : memref<1x128xf32, #tpu.memory_space<vmem>>, vector<1x128xf32>
    %15 = vector.broadcast %14 : vector<1x128xf32> to vector<32x128xf32>
    %16 = arith.addf %13, %15 : vector<32x128xf32>
    %cst_11 = arith.constant 0.000000e+00 : f32
    %17 = vector.broadcast %cst_11 : f32 to vector<32x128xf32>
    %18 = arith.maximumf %16, %17 : vector<32x128xf32>
    %19 = arith.truncf %18 : vector<32x128xf32> to vector<32x128xbf16>
    %c0_12 = arith.constant 0 : index
    %c0_13 = arith.constant 0 : index
    %20 = vector.load %arg6[%c0_12, %c0_13] : memref<32x128xbf16, #tpu.memory_space<vmem>>, vector<32x128xbf16>
    tpu.vector_store %arg6[%c0_12, %c0_13], %19 {strides = array<i32>} : memref<32x128xbf16, #tpu.memory_space<vmem>>, vector<32x128xbf16>,
    return
  }
  func.func @transform_0(%arg0: i32) -> (i32, i32) {
    %c0_i32 = arith.constant 0 : i32
    %c0_i32_0 = arith.constant 0 : i32
    return %arg0, %c0_i32 : i32, i32
  }
  func.func @transform_1(%arg0: i32) -> (i32, i32) {
    %c0_i32 = arith.constant 0 : i32
    %c0_i32_0 = arith.constant 0 : i32
    %c0_i32_1 = arith.constant 0 : i32
    return %c0_i32, %c0_i32_0 : i32, i32
  }
  func.func @transform_2(%arg0: i32) -> (i32, i32) {
    %c0_i32 = arith.constant 0 : i32
    %c0_i32_0 = arith.constant 0 : i32
    return %arg0, %c0_i32 : i32, i32
  }
  func.func @transform_3(%arg0: i32) -> (i32, i32) {
    %c0_i32 = arith.constant 0 : i32
    %c0_i32_0 = arith.constant 0 : i32
    %c0_i32_1 = arith.constant 0 : i32
    return %c0_i32, %c0_i32_0 : i32, i32
  }
  func.func @transform_4(%arg0: i32) -> (i32, i32) {
    %c0_i32 = arith.constant 0 : i32
    %c0_i32_0 = arith.constant 0 : i32
    %c0_i32_1 = arith.constant 0 : i32
    return %c0_i32, %c0_i32_0 : i32, i32
  }
  func.func @transform_5(%arg0: i32) -> (i32, i32) {
    %c0_i32 = arith.constant 0 : i32
    %c0_i32_0 = arith.constant 0 : i32
    return %arg0, %c0_i32 : i32, i32
  }
}

</mosaic_0001>

<llo_original>
// kernel: tpu_custom_call.1
$region0: #{tpu_custom_call.1}
  #allocation0 [shape = 'u32[]', space=smem, size = 0x4, offset = 0x4, fixed_abs, tag = 'smem constant byte address 0x4 - core index']
  #allocation1 [shape = 'u32[144,128]{1,0:T(1,128)}', space=vmem, size = 0x12000, scoped, tag = 'internal scratch']
  %s0 = inlined_call_operand.vmem [shape: bf16[64,64], index: 0, kind: input, shape index: {}]
  %s1 = inlined_call_operand.vmem [shape: bf16[64,32], index: 1, kind: input, shape index: {}]
  %s2 = inlined_call_operand.vmem [shape: f32[64,1], index: 2, kind: input, shape index: {}]
  %s3 = inlined_call_operand.vmem [shape: bf16[64,128], index: 3, kind: input, shape index: {}]
  %s4 = inlined_call_operand.vmem [shape: f32[1,128], index: 4, kind: input, shape index: {}]
  %s5 = inlined_call_operand.hbm [shape: bf16[64,128], index: 5, kind: output, shape index: {}]
  %s6 = sld [smem:[#allocation0]]
  $region53: #{tpu_custom_call.1} parent=0
    _
  %s8 = ssub.s32 1, %s6
  %s9 = scalar_select 0, %s8, %s6
  $region1: #{tpu_custom_call.1} parent=0
    #allocation2 [shape = 'u8[16384]{0}', space=vmem, size = 0x4000, scoped, tag = 'output window, operand 0']
    #allocation3 [shape = 's32[2]{0}', space=sflag, size = 0x8, scoped, tag = 'scoped memory for tpu_custom_call.1']
    %10 = vsyncpa [#allocation3], 0
    %s11 = scalar_lea.sflag [#allocation3], 1
    %12 = vsyncpa %s11, 0
    loop: start=0, step=1, limit=4
    $region2: #{tpu_custom_call.1} parent=1 // loop_pre_header
      _
    $region3: #{tpu_custom_call.1} parent=1 // loop_header
      %s14 = sphi 0, %s18
      %p15 = scmp.ge.s32.totalorder %s14, 4
      %s24 = sphi 0, %s26
      %s27 = sphi 0, %s24
      %s28 = sphi 0, %s27
      %s44 = sphi 0, %s28
      %s48 = sphi 0, %s48
      %s50 = sphi 0, %s48
      %s51 = sphi 0, %s50
      %s65 = sphi 0, %s51
      %s71 = sphi 0, %s73
      %s74 = sphi 0, %s71
      %s75 = sphi 0, %s74
      %s91 = sphi 0, %s75
      %s95 = sphi 0, %s95
      %s97 = sphi 0, %s95
      %s98 = sphi 0, %s97
      %s112 = sphi 0, %s98
      %s116 = sphi 0, %s116
      %s118 = sphi 0, %s116
      %s119 = sphi 0, %s118
      %s133 = sphi 0, %s119
      %s139 = sphi 0, %s141
      %s142 = sphi 0, %s139
      %s143 = sphi 0, %s142
      %s159 = sphi 0, %s143
    $region4: #{tpu_custom_call.1} parent=1 // loop_header_branch
      %17 = sbr.rel (%p15) target = $region8
    $region5: #{tpu_custom_call.1} parent=1 // loop_body
      %s19 = ssub.s32 %s14, 1
      %s20 = ssub.s32 %s14, 2
      %s21 = sadd.s32 %s14, 1
      %s22 = ssub.s32 %s14, %s21
      %p23 = scmp.eq.s32.totalorder %s22, 0
      %s25 = sadd.s32 %s24, 1
      %s26 = scalar_select %p23, %s24, %s25
      %p29 = pneg %p23
      %p30 = scmp.eq.s32.totalorder %s14, 1
      %p31 = por %p29, %p30
      %p32 = scmp.ne.s32.totalorder %s24, %s27
      %p33 = scmp.eq.s32.totalorder %s14, 0
      %p34 = por %p32, %p33
      %p35 = scmp.ne.s32.totalorder %s24, %s27
      %p36 = scmp.eq.s32.totalorder %s19, 1
      %p37 = por %p35, %p36
      %p38 = scmp.ne.s32.totalorder %s27, %s28
      %p39 = scmp.eq.s32.totalorder %s19, 0
      %p40 = por %p38, %p39
      %p41 = scmp.ne.s32.totalorder %s27, %s28
      %p42 = scmp.eq.s32.totalorder %s20, 1
      %p43 = por %p41, %p42
      %p45 = scmp.ne.s32.totalorder %s28, %s44
      %p46 = scmp.eq.s32.totalorder %s20, 0
      %p47 = por %p45, %p46
      %s49 = sadd.s32 %s48, 1
      %p52 = scmp.eq.s32.totalorder %s14, 1
      %p53 = scmp.ne.s32.totalorder %s48, %s50
      %p54 = scmp.eq.s32.totalorder %s14, 0
      %p55 = por %p53, %p54
      %p56 = scmp.ne.s32.totalorder %s48, %s50
      %p57 = scmp.eq.s32.totalorder %s19, 1
      %p58 = por %p56, %p57
      %p59 = scmp.ne.s32.totalorder %s50, %s51
      %p60 = scmp.eq.s32.totalorder %s19, 0
      %p61 = por %p59, %p60
      %p62 = scmp.ne.s32.totalorder %s50, %s51
      %p63 = scmp.eq.s32.totalorder %s20, 1
      %p64 = por %p62, %p63
      %p66 = scmp.ne.s32.totalorder %s51, %s65
      %p67 = scmp.eq.s32.totalorder %s20, 0
      %p68 = por %p66, %p67
      %s69 = ssub.s32 %s14, %s21
      %p70 = scmp.eq.s32.totalorder %s69, 0
      %s72 = sadd.s32 %s71, 1
      %s73 = scalar_select %p70, %s71, %s72
      %p76 = pneg %p70
      %p77 = scmp.eq.s32.totalorder %s14, 1
      %p78 = por %p76, %p77
      %p79 = scmp.ne.s32.totalorder %s71, %s74
      %p80 = scmp.eq.s32.totalorder %s14, 0
      %p81 = por %p79, %p80
      %p82 = scmp.ne.s32.totalorder %s71, %s74
      %p83 = scmp.eq.s32.totalorder %s19, 1
      %p84 = por %p82, %p83
      %p85 = scmp.ne.s32.totalorder %s74, %s75
      %p86 = scmp.eq.s32.totalorder %s19, 0
      %p87 = por %p85, %p86
      %p88 = scmp.ne.s32.totalorder %s74, %s75
      %p89 = scmp.eq.s32.totalorder %s20, 1
      %p90 = por %p88, %p89
      %p92 = scmp.ne.s32.totalorder %s75, %s91
      %p93 = scmp.eq.s32.totalorder %s20, 0
      %p94 = por %p92, %p93
      %s96 = sadd.s32 %s95, 1
      %p99 = scmp.eq.s32.totalorder %s14, 1
      %p100 = scmp.ne.s32.totalorder %s95, %s97
      %p101 = scmp.eq.s32.totalorder %s14, 0
      %p102 = por %p100, %p101
      %p103 = scmp.ne.s32.totalorder %s95, %s97
      %p104 = scmp.eq.s32.totalorder %s19, 1
      %p105 = por %p103, %p104
      %p106 = scmp.ne.s32.totalorder %s97, %s98
      %p107 = scmp.eq.s32.totalorder %s19, 0
      %p108 = por %p106, %p107
      %p109 = scmp.ne.s32.totalorder %s97, %s98
      %p110 = scmp.eq.s32.totalorder %s20, 1
      %p111 = por %p109, %p110
      %p113 = scmp.ne.s32.totalorder %s98, %s112
      %p114 = scmp.eq.s32.totalorder %s20, 0
      %p115 = por %p113, %p114
      %s117 = sadd.s32 %s116, 1
      %p120 = scmp.eq.s32.totalorder %s14, 1
      %p121 = scmp.ne.s32.totalorder %s116, %s118
      %p122 = scmp.eq.s32.totalorder %s14, 0
      %p123 = por %p121, %p122
      %p124 = scmp.ne.s32.totalorder %s116, %s118
      %p125 = scmp.eq.s32.totalorder %s19, 1
      %p126 = por %p124, %p125
      %p127 = scmp.ne.s32.totalorder %s118, %s119
      %p128 = scmp.eq.s32.totalorder %s19, 0
      %p129 = por %p127, %p128
      %p130 = scmp.ne.s32.totalorder %s118, %s119
      %p131 = scmp.eq.s32.totalorder %s20, 1
      %p132 = por %p130, %p131
      %p134 = scmp.ne.s32.totalorder %s119, %s133
      %p135 = scmp.eq.s32.totalorder %s20, 0
      %p136 = por %p134, %p135
      %s137 = ssub.s32 %s14, %s21
      %p138 = scmp.eq.s32.totalorder %s137, 0
      %s140 = sadd.s32 %s139, 1
      %s141 = scalar_select %p138, %s139, %s140
      %p144 = pneg %p138
      %p145 = scmp.eq.s32.totalorder %s14, 1
      %p146 = por %p144, %p145
      %p147 = scmp.ne.s32.totalorder %s139, %s142
      %p148 = scmp.eq.s32.totalorder %s14, 0
      %p149 = por %p147, %p148
      %p150 = scmp.ne.s32.totalorder %s139, %s142
      %p151 = scmp.eq.s32.totalorder %s19, 1
      %p152 = por %p150, %p151
      %p153 = scmp.ne.s32.totalorder %s142, %s143
      %p154 = scmp.eq.s32.totalorder %s19, 0
      %p155 = por %p153, %p154
      %p156 = scmp.ne.s32.totalorder %s142, %s143
      %p157 = scmp.eq.s32.totalorder %s20, 1
      %p158 = por %p156, %p157
      %p160 = scmp.ne.s32.totalorder %s143, %s159
      %p161 = scmp.eq.s32.totalorder %s20, 0
      %p162 = por %p160, %p161
      %p163 = scmp.le.s32.totalorder 1, %s14
      %p164 = scmp.lt.s32.totalorder %s14, 3
      %p165 = pnand %p163, %p164
      %p166 = pneg %p165
      // Predicated region
      $region9: #{tpu_custom_call.1} parent=5 // pred_check
        _
      $region10: #{tpu_custom_call.1} parent=5 // pred_check_branch
        %168 = sbr.rel (%p165) target = $region12
      $region11: #{tpu_custom_call.1} parent=5 // pred_region
        %s169 = ssub.s32 %s14, 1
        // Predicated region
        $region13: #{tpu_custom_call.1} parent=11 // pred_check
          %p170 = pneg %p61
        $region14: #{tpu_custom_call.1} parent=11 // pred_check_branch
          %172 = sbr.rel (%p170) target = $region16
        $region15: #{tpu_custom_call.1} parent=11 // pred_region
          _
        $region16: #{tpu_custom_call.1} parent=11 // pred_fallthru
          _
        // Predicated region
        $region17: #{tpu_custom_call.1} parent=11 // pred_check
          %p173 = pneg %p108
        $region18: #{tpu_custom_call.1} parent=11 // pred_check_branch
          %175 = sbr.rel (%p173) target = $region20
        $region19: #{tpu_custom_call.1} parent=11 // pred_region
          _
        $region20: #{tpu_custom_call.1} parent=11 // pred_fallthru
          _
        // Predicated region
        $region21: #{tpu_custom_call.1} parent=11 // pred_check
          %p176 = pneg %p129
        $region22: #{tpu_custom_call.1} parent=11 // pred_check_branch
          %178 = sbr.rel (%p176) target = $region24
        $region23: #{tpu_custom_call.1} parent=11 // pred_region
          _
        $region24: #{tpu_custom_call.1} parent=11 // pred_fallthru
          _
      $region12: #{tpu_custom_call.1} parent=5 // pred_fallthru
        _
      %p179 = scmp.lt.s32.totalorder %s14, 2
      // Predicated region
      $region25: #{tpu_custom_call.1} parent=5 // pred_check
        %p180 = pneg %p179
      $region26: #{tpu_custom_call.1} parent=5 // pred_check_branch
        %182 = sbr.rel (%p180) target = $region28
      $region27: #{tpu_custom_call.1} parent=5 // pred_region
        // Predicated region
        $region29: #{tpu_custom_call.1} parent=27 // pred_check
          %p183 = pneg %p34
        $region30: #{tpu_custom_call.1} parent=27 // pred_check_branch
          %185 = sbr.rel (%p183) target = $region32
        $region31: #{tpu_custom_call.1} parent=27 // pred_region
          %s186 = smul.u32 4, %s14
          %p187 = scmp.lt.s32.totalorder %s186, 7
          %s188 = scalar_select %p187, %s186, 7
          %s189 = smul.addr %s188, 4
          %s190 = scalar_lea.vmem %s0, %s189
          %s191 = smul.u32 4, %s14
        $region32: #{tpu_custom_call.1} parent=27 // pred_fallthru
          _
        // Predicated region
        $region33: #{tpu_custom_call.1} parent=27 // pred_check
          %p192 = pneg %p81
        $region34: #{tpu_custom_call.1} parent=27 // pred_check_branch
          %194 = sbr.rel (%p192) target = $region36
        $region35: #{tpu_custom_call.1} parent=27 // pred_region
          %s195 = smul.u32 4, %s14
          %p196 = scmp.lt.s32.totalorder %s195, 7
          %s197 = scalar_select %p196, %s195, 7
          %s198 = smul.addr %s197, 8
          %s199 = scalar_lea.vmem %s2, %s198
          %s200 = smul.u32 4, %s14
        $region36: #{tpu_custom_call.1} parent=27 // pred_fallthru
          _
      $region28: #{tpu_custom_call.1} parent=5 // pred_fallthru
        _
      %p201 = scmp.le.s32.totalorder 1, %s14
      %p202 = scmp.lt.s32.totalorder %s14, 3
      %p203 = pnand %p201, %p202
      %p204 = pneg %p203
      // Predicated region
      $region37: #{tpu_custom_call.1} parent=5 // pred_check
        _
      $region38: #{tpu_custom_call.1} parent=5 // pred_check_branch
        %206 = sbr.rel (%p203) target = $region40
      $region39: #{tpu_custom_call.1} parent=5 // pred_region
        %s207 = ssub.s32 %s14, 1
        %s208 = smul.u32 4, %s19
        %p209 = scmp.lt.s32.totalorder %s208, 7
        %s210 = scalar_select %p209, %s208, 7
        %s211 = smul.addr %s210, 4
        %s212 = scalar_lea.vmem %s0, %s211
        %p213 = pneg %p40
        %p214 = pneg %p37
        %p215 = pneg %p61
        %p216 = pneg %p58
        %s217 = smul.u32 4, %s19
        %p218 = scmp.lt.s32.totalorder %s217, 7
        %s219 = scalar_select %p218, %s217, 7
        %s220 = smul.addr %s219, 8
        %s221 = scalar_lea.vmem %s2, %s220
        %p222 = pneg %p87
        %p223 = pneg %p84
        %p224 = pneg %p108
        %p225 = pneg %p105
        %p226 = pneg %p129
        %p227 = pneg %p126
        %p228 = pneg %p155
        %p229 = pneg %p152
        %s230 = sand.u32 %s142, 1
        %s231 = scalar_lea.sflag [#allocation3], %s230
        %s232 = sand.u32 %s142, 1
        %s233 = smul.addr %s232, 16
        %s234 = scalar_lea.vmem [#allocation2], %s233
        %s235 = smul.u32 4, %s19
        %p236 = scmp.lt.s32.totalorder %s235, 7
        %s237 = scalar_select %p236, %s235, 7
        %s238 = smul.addr %s237, 4
        %s239 = scalar_lea.vmem %s0, %s238
        %s240 = smul.u32 4, %s19
        %s241 = smul.u32 4, %s19
        %p242 = scmp.lt.s32.totalorder %s241, 7
        %s243 = scalar_select %p242, %s241, 7
        %s244 = smul.addr %s243, 8
        %s245 = scalar_lea.vmem %s2, %s244
        %s246 = smul.u32 4, %s19
        %s247 = smul.u32 4, %s19
        %s249 = smul.u32 %s19, 32
        %v250 = vld [vmem:[%s1] sm:$0xf]
        %v251 = vld [vmem:[%s1 + $0x4] sm:$0xf]
        %v252 = vld [vmem:[%s1 + $0x8] sm:$0xf]
        %v253 = vld [vmem:[%s1 + $0xc] sm:$0xf]
        %v254 = vld [vmem:[%s1 + $0x10] sm:$0xf]
        %v255 = vld [vmem:[%s1 + $0x14] sm:$0xf]
        %v256 = vld [vmem:[%s1 + $0x18] sm:$0xf]
        %v257 = vld [vmem:[%s1 + $0x1c] sm:$0xf]
        %s258 = sshra.s32 %s249, 3
        %s259 = sand.u32 %s249, 7
        %s260 = smul.addr %s258, 4
        %s261 = scalar_lea.vmem %s1, %s260
        %v262 = vld [vmem:[%s261] sm:$0xf]
        %v263 = vld [vmem:[%s261 + $0x4] sm:$0xf]
        %v264 = vld [vmem:[%s261 + $0x8] sm:$0xf]
        %v265 = vld [vmem:[%s261 + $0xc] sm:$0xf]
        %v266 = vld [vmem:[%s239] sm:$0xf]
        %v267 = vld [vmem:[%s239 + $0x4] sm:$0xf]
        %v268 = vld [vmem:[%s239 + $0x8] sm:$0xf]
        %v269 = vld [vmem:[%s239 + $0xc] sm:$0xf]
        %v274 = vunpack.c.l.b16 %v266
        %v275 = vunpack.c.l.b16 %v267
        %v276 = vunpack.c.l.b16 %v268
        %v277 = vunpack.c.l.b16 %v269
        %v278 = vpack.c.b16 %v275, %v274
        %v279 = vpack.c.b16 %v277, %v276
        %v288 = vunpack.c.l.b16 %v250
        %v289 = vunpack.c.l.b16 %v251
        %v290 = vunpack.c.l.b16 %v252
        %v291 = vunpack.c.l.b16 %v253
        %v292 = vunpack.c.l.b16 %v254
        %v293 = vunpack.c.l.b16 %v255
        %v294 = vunpack.c.l.b16 %v256
        %v295 = vunpack.c.l.b16 %v257
        %v296 = vpack.c.b16 %v289, %v288
        %v297 = vpack.c.b16 %v291, %v290
        %v298 = vpack.c.b16 %v293, %v292
        %v299 = vpack.c.b16 %v295, %v294
        %vm304 = vcmask 523264
        %v306 = vsel %vm304, %v278, 0
        %v309 = vsel %vm304, %v279, 0
        %311 = vmatprep.subr.bf16.mxu0 0
        %312 = vmatpush1.bf16.msra.mxu0 %v296
        %313 = vmatprep.subr.bf16.mxu0 0
        %314 = vmatpush1.bf16.msra.mxu0 %v297
        %315 = vmatprep.subr.bf16.mxu0 0
        %316 = vmatpush1.bf16.msra.mxu0 %v298
        %317 = vmatprep.subr.bf16.mxu0 0
        %318 = vmatpush1.bf16.msra.mxu0 %v299
        %319 = vmatprep.subr.bf16.mxu0 0
        %320 = vmatpush1.bf16.msra.mxu0 0
        %321 = vmatprep.subr.bf16.mxu0 0
        %322 = vmatpush1.bf16.msra.mxu0 0
        %323 = vmatprep.subr.bf16.mxu0 0
        %324 = vmatpush1.bf16.msra.mxu0 0
        %325 = vmatprep.subr.bf16.mxu0 0
        %326 = vmatpush1.bf16.msra.mxu0 0
        %327 = vmatprep.subr.bf16.mxu0 0
        %328 = vmatpush1.bf16.msra.mxu0 0
        %329 = vmatprep.subr.bf16.mxu0 0
        %330 = vmatpush1.bf16.msra.mxu0 0
        %331 = vmatprep.subr.bf16.mxu0 0
        %332 = vmatpush1.bf16.msra.mxu0 0
        %333 = vmatprep.subr.bf16.mxu0 0
        %334 = vmatpush1.bf16.msra.mxu0 0
        %335 = vmatprep.subr.bf16.mxu0 0
        %336 = vmatpush1.bf16.msra.mxu0 0
        %337 = vmatprep.subr.bf16.mxu0 0
        %338 = vmatpush1.bf16.msra.mxu0 0
        %339 = vmatprep.subr.bf16.mxu0 0
        %340 = vmatpush1.bf16.msra.mxu0 0
        %341 = vmatprep.subr.bf16.mxu0 0
        %342 = vmatpush1.bf16.msra.mxu0 0
        %343 = vmatprep.mubr.bf16.mxu0 0
        %344 = vmatmul.mubr.bf16.gmra.mrb[0].mxu0 %v306
        %v345 = vpop.f32.mrb[0].mxu0
        %v346 = vadd.f32 0.0, %v345
        %v347 = vpop.f32.mrb[0].mxu0
        %v348 = vpop.f32.mrb[0].mxu0
        %v349 = vadd.f32 0.0, %v348
        %v350 = vpop.f32.mrb[0].mxu0
        %351 = vmatprep.mubr.bf16.mxu0 0
        %352 = vmatmul.mubr.bf16.gmra.mrb[0].mxu0 %v309
        %v353 = vpop.f32.mrb[0].mxu0
        %v354 = vadd.f32 0.0, %v353
        %v355 = vpop.f32.mrb[0].mxu0
        %v356 = vpop.f32.mrb[0].mxu0
        %v357 = vadd.f32 0.0, %v356
        %v358 = vpop.f32.mrb[0].mxu0
        %359 = vdwg.mxu0
        %v360 = vld [vmem:[%s245] sm:$0xff]
        %v361 = vld [vmem:[%s245 + $0x8] sm:$0xff]
        %v362 = vld [vmem:[%s245 + $0x10] sm:$0xff]
        %v363 = vld [vmem:[%s245 + $0x18] sm:$0xff]
        %365 = vset.pattern.permute.xlu0 0
        %366 = vperm.xlu0 %365, %v360
        %v367 = vpop.permute.xlu0 %366
        %370 = vset.pattern.permute.xlu0 0
        %371 = vperm.xlu0 %370, %v361
        %v372 = vpop.permute.xlu0 %371
        %375 = vset.pattern.permute.xlu0 0
        %376 = vperm.xlu0 %375, %v362
        %v377 = vpop.permute.xlu0 %376
        %380 = vset.pattern.permute.xlu0 0
        %381 = vperm.xlu0 %380, %v363
        %v382 = vpop.permute.xlu0 %381
        %v384 = vmul.f32 %v346, %v367
        %v385 = vmul.f32 %v349, %v372
        %v386 = vmul.f32 %v354, %v377
        %v387 = vmul.f32 %v357, %v382
        %v388 = vpack.c.bf16 %v385, %v384
        %v389 = vpack.c.bf16 %v387, %v386
        %v394 = vunpack.c.l.b16 %v262
        %v395 = vunpack.c.l.b16 %v263
        %v396 = vunpack.c.l.b16 %v264
        %v397 = vunpack.c.l.b16 %v265
        %v398 = vpack.c.b16 %v395, %v394
        %v399 = vpack.c.b16 %v397, %v396
        %400 = vrot.lane.b32.xlu0 %v398, 32
        %v401 = vpop.permute.xlu0 %400
        %402 = vrot.lane.b32.xlu0 %v399, 32
        %v403 = vpop.permute.xlu0 %402
        %vm404 = vcmask 261120
        %v407 = vsel %vm404, %v388, %v401
        %v410 = vsel %vm404, %v389, %v403
        %v411 = vld [vmem:[%s3] sm:$0xf]
        %v412 = vld [vmem:[%s3 + $0x4] sm:$0xf]
        %v413 = vld [vmem:[%s3 + $0x8] sm:$0xf]
        %v414 = vld [vmem:[%s3 + $0xc] sm:$0xf]
        %v415 = vld [vmem:[%s3 + $0x10] sm:$0xf]
        %v416 = vld [vmem:[%s3 + $0x14] sm:$0xf]
        %v417 = vld [vmem:[%s3 + $0x18] sm:$0xf]
        %v418 = vld [vmem:[%s3 + $0x1c] sm:$0xf]
        %v419 = vld [vmem:[%s4] sm:$0x1]
        %v421 = vlaneseq
        %v422 = vshrl.u32 %v421, 7
        %v423 = vsub.s32 0, %v422
        %v424 = vrot.slane %v419, %v423
        %v434 = vunpack.c.l.b16 %v411
        %v435 = vunpack.c.l.b16 %v412
        %v436 = vunpack.c.l.b16 %v413
        %v437 = vunpack.c.l.b16 %v414
        %v438 = vunpack.c.l.b16 %v415
        %v439 = vunpack.c.l.b16 %v416
        %v440 = vunpack.c.l.b16 %v417
        %v441 = vunpack.c.l.b16 %v418
        %v442 = vpack.c.b16 %v435, %v434
        %v443 = vpack.c.b16 %v437, %v436
        %v444 = vpack.c.b16 %v439, %v438
        %v445 = vpack.c.b16 %v441, %v440
        %v450 = vsel %vm304, %v407, 0
        %v452 = vsel %vm304, %v410, 0
        %454 = vmatprep.subr.bf16.mxu0 0
        %455 = vmatpush1.bf16.msra.mxu0 %v442
        %456 = vmatprep.subr.bf16.mxu0 0
        %457 = vmatpush1.bf16.msra.mxu0 %v443
        %458 = vmatprep.subr.bf16.mxu0 0
        %459 = vmatpush1.bf16.msra.mxu0 %v444
        %460 = vmatprep.subr.bf16.mxu0 0
        %461 = vmatpush1.bf16.msra.mxu0 %v445
        %462 = vmatprep.subr.bf16.mxu0 0
        %463 = vmatpush1.bf16.msra.mxu0 0
        %464 = vmatprep.subr.bf16.mxu0 0
        %465 = vmatpush1.bf16.msra.mxu0 0
        %466 = vmatprep.subr.bf16.mxu0 0
        %467 = vmatpush1.bf16.msra.mxu0 0
        %468 = vmatprep.subr.bf16.mxu0 0
        %469 = vmatpush1.bf16.msra.mxu0 0
        %470 = vmatprep.subr.bf16.mxu0 0
        %471 = vmatpush1.bf16.msra.mxu0 0
        %472 = vmatprep.subr.bf16.mxu0 0
        %473 = vmatpush1.bf16.msra.mxu0 0
        %474 = vmatprep.subr.bf16.mxu0 0
        %475 = vmatpush1.bf16.msra.mxu0 0
        %476 = vmatprep.subr.bf16.mxu0 0
        %477 = vmatpush1.bf16.msra.mxu0 0
        %478 = vmatprep.subr.bf16.mxu0 0
        %479 = vmatpush1.bf16.msra.mxu0 0
        %480 = vmatprep.subr.bf16.mxu0 0
        %481 = vmatpush1.bf16.msra.mxu0 0
        %482 = vmatprep.subr.bf16.mxu0 0
        %483 = vmatpush1.bf16.msra.mxu0 0
        %484 = vmatprep.subr.bf16.mxu0 0
        %485 = vmatpush1.bf16.msra.mxu0 0
        %486 = vmatprep.mubr.bf16.mxu0 0
        %487 = vmatmul.mubr.bf16.gmra.mrb[0].mxu0 %v450
        %v488 = vpop.f32.mrb[0].mxu0
        %v489 = vadd.f32 %v424, %v488
        %v490 = vpop.f32.mrb[0].mxu0
        %v491 = vpop.f32.mrb[0].mxu0
        %v492 = vadd.f32 %v424, %v491
        %v493 = vpop.f32.mrb[0].mxu0
        %494 = vmatprep.mubr.bf16.mxu0 0
        %495 = vmatmul.mubr.bf16.gmra.mrb[0].mxu0 %v452
        %v496 = vpop.f32.mrb[0].mxu0
        %v497 = vadd.f32 %v424, %v496
        %v498 = vpop.f32.mrb[0].mxu0
        %v499 = vpop.f32.mrb[0].mxu0
        %v500 = vadd.f32 %v424, %v499
        %v501 = vpop.f32.mrb[0].mxu0
        %502 = vdwg.mxu0
        %v503 = vmax.f32 %v489, 0.0
        %v504 = vmax.f32 %v492, 0.0
        %v505 = vmax.f32 %v497, 0.0
        %v506 = vmax.f32 %v500, 0.0
        %v507 = vpack.c.bf16 %v504, %v503
        %v508 = vpack.c.bf16 %v506, %v505
        %v511 = vunpack.c.l.b16 %v507
        %v512 = vunpack.c.h.b16 %v507
        %v513 = vunpack.c.l.b16 %v508
        %v514 = vunpack.c.h.b16 %v508
        %v515 = vpack.c.b16 %v511, %v511
        %v516 = vpack.c.b16 %v512, %v512
        %v517 = vpack.c.b16 %v513, %v513
        %v518 = vpack.c.b16 %v514, %v514
        %523 = vst [vmem:[%s234] sm:$0xf] %v515
        %524 = vst [vmem:[%s234 + $0x4] sm:$0xf] %v516
        %525 = vst [vmem:[%s234 + $0x8] sm:$0xf] %v517
        %526 = vst [vmem:[%s234 + $0xc] sm:$0xf] %v518
        %s527 = sand.u32 %s142, 1
        %s528 = scalar_lea.sflag [#allocation3], %s527
        %s529 = sand.u32 %s142, 1
        %s530 = smul.addr %s529, 16
        %s531 = scalar_lea.vmem [#allocation2], %s530
        // Predicated region
        $region41: #{tpu_custom_call.1} parent=39 // pred_check
          %p532 = pneg %p152
        $region42: #{tpu_custom_call.1} parent=39 // pred_check_branch
          %534 = sbr.rel (%p532) target = $region44
        $region43: #{tpu_custom_call.1} parent=39 // pred_region
          %s535 = smul.u32 4, %s19
          %s537 = ssub.s32 256, 256
          %538 = vsyncadd %s528, %s537
          %s539 = smul.addr %s535, 64
          %s540 = scalar_lea.hbm %s5, %s539
          %s541 = sshll.u32 %s531, 4
          %s542 = int_to_ptr.vmem [resolvable:$true] %s541
          %547 = dma.vmem_to_hbm [thread:$0]  %s542, 256, %s540, %s528, 64, 64, 4
        $region44: #{tpu_custom_call.1} parent=39 // pred_fallthru
          _
      $region40: #{tpu_custom_call.1} parent=5 // pred_fallthru
        _
      %p548 = scmp.le.s32.totalorder 2, %s14
      // Predicated region
      $region45: #{tpu_custom_call.1} parent=5 // pred_check
        %p549 = pneg %p548
      $region46: #{tpu_custom_call.1} parent=5 // pred_check_branch
        %551 = sbr.rel (%p549) target = $region48
      $region47: #{tpu_custom_call.1} parent=5 // pred_region
        %s552 = ssub.s32 %s14, 2
        // Predicated region
        $region49: #{tpu_custom_call.1} parent=47 // pred_check
          %p553 = pneg %p158
        $region50: #{tpu_custom_call.1} parent=47 // pred_check_branch
          %555 = sbr.rel (%p553) target = $region52
        $region51: #{tpu_custom_call.1} parent=47 // pred_region
          %s556 = sand.u32 %s143, 1
          %s557 = scalar_lea.sflag [#allocation3], %s556
          %s558 = sand.u32 %s143, 1
          %s559 = smul.addr %s558, 16
          %s560 = scalar_lea.vmem [#allocation2], %s559
          %561 = dma.done %s557, 256
        $region52: #{tpu_custom_call.1} parent=47 // pred_fallthru
          _
      $region48: #{tpu_custom_call.1} parent=5 // pred_fallthru
        _
    $region6: #{tpu_custom_call.1} parent=1 // loop_footer
      %s18 = sadd.s32 1, %s14
    $region7: #{tpu_custom_call.1} parent=1 // loop_footer_branch
      %13 = sbr.rel target = $region3
    $region8: #{tpu_custom_call.1} parent=1 // loop_exit
      _
    %562 = vsyncpa [#allocation3], 1
    %s563 = scalar_lea.sflag [#allocation3], 1
    %564 = vsyncpa %s563, 1

</llo_original>
